<compile_context>
chip_gen: v6e
topology: v6e:2x2x1
jax: 0.10.0
libtpu: 0.0.40
codegen_flags: <defaults>
</compile_context>

<pallas_src>
import functools

import jax
import jax.numpy as jnp
from jax.experimental import pallas as pl
from jax.experimental.pallas import tpu as pltpu

BN_EPS = 1e-5


def special_fc_kernel(x_ref, w_ref, gamma_ref, beta_ref, o_ref):
    # x_ref:     (B, C_in)   full batch, full input features (VMEM resident)
    # w_ref:     (C_in, F)   full weight matrix
    # gamma_ref: (1, F)
    # beta_ref:  (1, F)
    # o_ref:     (B, F)      single lane-dense output slab
    x = x_ref[...]
    w = w_ref[...]

    # Linear (bias omitted: it is cancelled exactly by the BN mean subtraction).
    y = jnp.dot(x, w, preferred_element_type=jnp.float32)

    # BatchNorm1d (training mode): per-feature batch mean / biased variance.
    mean = jnp.mean(y, axis=0, keepdims=True)
    centered = y - mean
    var = jnp.mean(centered * centered, axis=0, keepdims=True)

    # Fold gamma into the rsqrt scale: one [1,F] EUP rsqrt + one [1,F] mul,
    # then a single [B,F] multiply-add pass.
    scale = gamma_ref[...] * jax.lax.rsqrt(var + BN_EPS)
    y_bn = centered * scale + beta_ref[...]

    # ReLU
    o_ref[...] = jnp.maximum(y_bn, 0.0).astype(o_ref.dtype)


@jax.jit
def special_fc(x, w, b, gamma, beta):
    """x: [B, C_in], w: [C_in, F], b/gamma/beta: [1, F] -> [B, F].

    `b` is accepted for interface parity with the PyTorch Linear layer but is
    mathematically cancelled by the training-mode BatchNorm that follows, so
    it is not passed to the device kernel.
    """
    del b  # cancelled by BN mean subtraction
    B, C_in = x.shape
    F = w.shape[1]

    cost = pl.CostEstimate(
        flops=2 * B * C_in * F + 6 * B * F,          # matmul + BN/ReLU epilogue
        transcendentals=F,                           # rsqrt per output feature
        bytes_accessed=4 * (B * C_in + C_in * F + 2 * F + B * F),
    )

    vmem = pltpu.MemorySpace.VMEM
    return pl.pallas_call(
        special_fc_kernel,
        out_shape=jax.ShapeDtypeStruct((B, F), jnp.float32),
        in_specs=[
            pl.BlockSpec(memory_space=vmem),   # x
            pl.BlockSpec(memory_space=vmem),   # w
            pl.BlockSpec(memory_space=vmem),   # gamma
            pl.BlockSpec(memory_space=vmem),   # beta
        ],
        out_specs=pl.BlockSpec(memory_space=vmem),
        cost_estimate=cost,
    )(x, w, gamma, beta)


def reference(x, w, b, gamma, beta):
    # Full PyTorch-equivalent reference *including* the Linear bias, to show
    # the kernel (which drops b) matches it bit-for-practical-purposes.
    y = x @ w + b
    mean = jnp.mean(y, axis=0, keepdims=True)
    var = jnp.mean((y - mean) ** 2, axis=0, keepdims=True)
    y = (y - mean) / jnp.sqrt(var + BN_EPS) * gamma + beta
    return jnp.maximum(y, 0.0)


if __name__ == "__main__":
    # Shapes consistent with the module: batch=8, input_channel=32,
    # fea_out=512 (the module default).
    B, C_IN, FEA_OUT = 8, 32, 512

    key = jax.random.PRNGKey(0)
    kx, kw, kb = jax.random.split(key, 3)

    x = jax.random.normal(kx, (B, C_IN), dtype=jnp.float32)

    # Deterministic "Linear" init (PyTorch-style uniform bounds).
    bound = 1.0 / (C_IN ** 0.5)
    w = jax.random.uniform(kw, (C_IN, FEA_OUT), minval=-bound, maxval=bound,
                           dtype=jnp.float32)
    b = jax.random.uniform(kb, (1, FEA_OUT), minval=-bound, maxval=bound,
                           dtype=jnp.float32)

    # BatchNorm1d default affine params.
    gamma = jnp.ones((1, FEA_OUT), dtype=jnp.float32)
    beta = jnp.zeros((1, FEA_OUT), dtype=jnp.float32)

    out = special_fc(x, w, b, gamma, beta)
    out = jax.block_until_ready(out)

    ref = reference(x, w, b, gamma, beta)
    assert out.shape == (B, FEA_OUT)
    assert jnp.allclose(out, ref, atol=1e-4, rtol=1e-4), "mismatch vs reference"

    print("KERNEL_OK")
</pallas_src>

<mosaic_0001>
module attributes {stable_mosaic.version = 11 : i64} {
  func.func @special_fc_kernel(%arg0: memref<8x32xf32, #tpu.memory_space<vmem>>, %arg1: memref<32x512xf32, #tpu.memory_space<vmem>>, %arg2: memref<1x512xf32, #tpu.memory_space<vmem>>, %arg3: memref<1x512xf32, #tpu.memory_space<vmem>>, %arg4: memref<8x512xf32, #tpu.memory_space<vmem>>) attributes {dimension_semantics = [], scalar_prefetch = 0 : i64, scratch_operands = 0 : i64, tpu.core_type = #tpu.core_type<tc>} {
    %c0 = arith.constant 0 : index
    %c0_0 = arith.constant 0 : index
    %0 = vector.load %arg0[%c0, %c0_0] : memref<8x32xf32, #tpu.memory_space<vmem>>, vector<8x32xf32>
    %c0_1 = arith.constant 0 : index
    %c0_2 = arith.constant 0 : index
    %1 = vector.load %arg1[%c0_1, %c0_2] : memref<32x512xf32, #tpu.memory_space<vmem>>, vector<32x512xf32>
    %cst = arith.constant dense<0.000000e+00> : vector<8x512xf32>
    %2 = tpu.matmul %0, %1, %cst {dimension_numbers = #tpu.dot_dimension_numbers<[1], [0], [0], [1], [0, 0, 1, 1], [], []>} : vector<8x32xf32>, vector<32x512xf32>, vector<8x512xf32> -> vector<8x512xf32>
    %cst_3 = arith.constant dense<0.000000e+00> : vector<512xf32>
    %3 = vector.multi_reduction <add>, %2, %cst_3 [0] : vector<8x512xf32> to vector<512xf32>
    %4 = vector.shape_cast %3 : vector<512xf32> to vector<1x512xf32>
    %cst_4 = arith.constant 8.000000e+00 : f32
    %5 = vector.broadcast %cst_4 : f32 to vector<1x512xf32>
    %6 = arith.divf %4, %5 : vector<1x512xf32>
    %7 = vector.broadcast %6 : vector<1x512xf32> to vector<8x512xf32>
    %8 = arith.subf %2, %7 : vector<8x512xf32>
    %9 = arith.mulf %8, %8 : vector<8x512xf32>
    %cst_5 = arith.constant dense<0.000000e+00> : vector<512xf32>
    %10 = vector.multi_reduction <add>, %9, %cst_5 [0] : vector<8x512xf32> to vector<512xf32>
    %11 = vector.shape_cast %10 : vector<512xf32> to vector<1x512xf32>
    %cst_6 = arith.constant 8.000000e+00 : f32
    %12 = vector.broadcast %cst_6 : f32 to vector<1x512xf32>
    %13 = arith.divf %11, %12 : vector<1x512xf32>
    %c0_7 = arith.constant 0 : index
    %c0_8 = arith.constant 0 : index
    %14 = vector.load %arg2[%c0_7, %c0_8] : memref<1x512xf32, #tpu.memory_space<vmem>>, vector<1x512xf32>
    %cst_9 = arith.constant 9.99999974E-6 : f32
    %15 = vector.broadcast %cst_9 : f32 to vector<1x512xf32>
    %16 = arith.addf %13, %15 : vector<1x512xf32>
    %17 = math.rsqrt %16 : vector<1x512xf32>
    %18 = arith.mulf %14, %17 : vector<1x512xf32>
    %19 = vector.broadcast %18 : vector<1x512xf32> to vector<8x512xf32>
    %20 = arith.mulf %8, %19 : vector<8x512xf32>
    %c0_10 = arith.constant 0 : index
    %c0_11 = arith.constant 0 : index
    %21 = vector.load %arg3[%c0_10, %c0_11] : memref<1x512xf32, #tpu.memory_space<vmem>>, vector<1x512xf32>
    %22 = vector.broadcast %21 : vector<1x512xf32> to vector<8x512xf32>
    %23 = arith.addf %20, %22 : vector<8x512xf32>
    %cst_12 = arith.constant 0.000000e+00 : f32
    %24 = vector.broadcast %cst_12 : f32 to vector<8x512xf32>
    %25 = arith.maximumf %23, %24 : vector<8x512xf32>
    %c0_13 = arith.constant 0 : index
    %c0_14 = arith.constant 0 : index
    %26 = vector.load %arg4[%c0_13, %c0_14] : memref<8x512xf32, #tpu.memory_space<vmem>>, vector<8x512xf32>
    tpu.vector_store %arg4[%c0_13, %c0_14], %25 {strides = array<i32>} : memref<8x512xf32, #tpu.memory_space<vmem>>, vector<8x512xf32>,
    return
  }
}

</mosaic_0001>

<llo_original>
// kernel: special_fc.1
$region0: #{special_fc.1}
  #allocation0 [shape = 'u32[]', space=smem, size = 0x4, offset = 0x4, fixed_abs, tag = 'smem constant byte address 0x4 - core index']
  #allocation1 [shape = 'u32[144,128]{1,0:T(1,128)}', space=vmem, size = 0x12000, scoped, tag = 'internal scratch']
  %s0 = inlined_call_operand.hbm [shape: f32[8,32], index: 0, kind: input, shape index: {}]
  %s1 = inlined_call_operand.hbm [shape: f32[32,512], index: 1, kind: input, shape index: {}]
  %s2 = inlined_call_operand.hbm [shape: f32[1,512], index: 2, kind: input, shape index: {}]
  %s3 = inlined_call_operand.vmem [shape: f32[1,512], index: 3, kind: input, shape index: {}]
  %s4 = inlined_call_operand.hbm [shape: f32[8,512], index: 4, kind: output, shape index: {}]
  %s5 = sld [smem:[#allocation0]]
  $region38: #{special_fc.1} parent=0
    _
  %s7 = ssub.s32 1, %s5
  %s8 = scalar_select 0, %s7, %s5
  $region1: #{special_fc.1} parent=0
    #allocation2 [shape = 'u8[4096]{0}', space=vmem, size = 0x1000, scoped, tag = 'input window, operand 0, single buffered']
    #allocation3 [shape = 's32[1]{0}', space=sflag, size = 0x4, scoped, tag = 'scoped memory for special_fc.1']
    #allocation4 [shape = 's32[1]{0}', space=sflag, size = 0x4, scoped, tag = 'scoped memory for special_fc.1']
    #allocation5 [shape = 'u8[65536]{0}', space=vmem, size = 0x10000, scoped, tag = 'input window, operand 1, single buffered']
    #allocation6 [shape = 's32[1]{0}', space=sflag, size = 0x4, scoped, tag = 'scoped memory for special_fc.1']
    #allocation7 [shape = 'u8[2048]{0}', space=vmem, size = 0x800, scoped, tag = 'input window, operand 2, single buffered']
    #allocation8 [shape = 'u8[16384]{0}', space=vmem, size = 0x4000, scoped, tag = 'output window, operand 0, single buffered']
    %9 = vsyncpa [#allocation3], 0
    %10 = vsyncpa [#allocation6], 0
    %11 = vsyncpa [#allocation4], 0
    // Predicated region
    $region2: #{special_fc.1} parent=1 // pred_check
      _
    $region3: #{special_fc.1} parent=1 // pred_check_branch
      %13 = sbr.rel (0) target = $region5
    $region4: #{special_fc.1} parent=1 // pred_region
      %s15 = ssub.s32 128, 128
      %16 = vsyncadd [#allocation3], %s15
      %s18 = sshll.u32 [#allocation2], 4
      %s19 = int_to_ptr.vmem [resolvable:$true] %s18
      %21 = dma.hbm_to_vmem [thread:$0]  %s0, 128, %s19, [#allocation3]
    $region5: #{special_fc.1} parent=1 // pred_fallthru
      _
    // Predicated region
    $region6: #{special_fc.1} parent=1 // pred_check
      _
    $region7: #{special_fc.1} parent=1 // pred_check_branch
      %23 = sbr.rel (0) target = $region9
    $region8: #{special_fc.1} parent=1 // pred_region
      %s25 = ssub.s32 2048, 2048
      %26 = vsyncadd [#allocation6], %s25
      %s27 = sshll.u32 [#allocation5], 4
      %s28 = int_to_ptr.vmem [resolvable:$true] %s27
      %33 = dma.hbm_to_vmem [thread:$0]  %s1, 2048, %s28, [#allocation6], 512, 512, 32
    $region9: #{special_fc.1} parent=1 // pred_fallthru
      _
    // Predicated region
    $region10: #{special_fc.1} parent=1 // pred_check
      _
    $region11: #{special_fc.1} parent=1 // pred_check_branch
      %35 = sbr.rel (0) target = $region13
    $region12: #{special_fc.1} parent=1 // pred_region
      %s37 = ssub.s32 64, 64
      %38 = vsyncadd [#allocation6], %s37
      %s40 = sshll.u32 [#allocation7], 4
      %s41 = int_to_ptr.vmem [resolvable:$true] %s40
      %43 = dma.hbm_to_vmem [thread:$0]  %s2, 64, %s41, [#allocation6]
    $region13: #{special_fc.1} parent=1 // pred_fallthru
      _
    // Predicated region
    $region14: #{special_fc.1} parent=1 // pred_check
      _
    $region15: #{special_fc.1} parent=1 // pred_check_branch
      %45 = sbr.rel (0) target = $region17
    $region16: #{special_fc.1} parent=1 // pred_region
      _
    $region17: #{special_fc.1} parent=1 // pred_fallthru
      _
    // Predicated region
    $region18: #{special_fc.1} parent=1 // pred_check
      _
    $region19: #{special_fc.1} parent=1 // pred_check_branch
      %47 = sbr.rel (0) target = $region21
    $region20: #{special_fc.1} parent=1 // pred_region
      %48 = dma.done [#allocation3], 128
    $region21: #{special_fc.1} parent=1 // pred_fallthru
      _
    // Predicated region
    $region22: #{special_fc.1} parent=1 // pred_check
      _
    $region23: #{special_fc.1} parent=1 // pred_check_branch
      %50 = sbr.rel (0) target = $region25
    $region24: #{special_fc.1} parent=1 // pred_region
      %51 = dma.done [#allocation6], 2048
    $region25: #{special_fc.1} parent=1 // pred_fallthru
      _
    // Predicated region
    $region26: #{special_fc.1} parent=1 // pred_check
      _
    $region27: #{special_fc.1} parent=1 // pred_check_branch
      %53 = sbr.rel (0) target = $region29
    $region28: #{special_fc.1} parent=1 // pred_region
      %54 = dma.done [#allocation6], 64
    $region29: #{special_fc.1} parent=1 // pred_fallthru
      _
    %v55 = vld [vmem:[#allocation2] sm:$0xff]
    %v56 = vld [vmem:[#allocation5] sm:$0xff]
    %v57 = vld [vmem:[#allocation5 + $0x8] sm:$0xff]
    %v58 = vld [vmem:[#allocation5 + $0x10] sm:$0xff]
    %v59 = vld [vmem:[#allocation5 + $0x18] sm:$0xff]
    %v60 = vld [vmem:[#allocation5 + $0x20] sm:$0xff]
    %v61 = vld [vmem:[#allocation5 + $0x28] sm:$0xff]
    %v62 = vld [vmem:[#allocation5 + $0x30] sm:$0xff]
    %v63 = vld [vmem:[#allocation5 + $0x38] sm:$0xff]
    %v64 = vld [vmem:[#allocation5 + $0x40] sm:$0xff]
    %v65 = vld [vmem:[#allocation5 + $0x48] sm:$0xff]
    %v66 = vld [vmem:[#allocation5 + $0x50] sm:$0xff]
    %v67 = vld [vmem:[#allocation5 + $0x58] sm:$0xff]
    %v68 = vld [vmem:[#allocation5 + $0x60] sm:$0xff]
    %v69 = vld [vmem:[#allocation5 + $0x68] sm:$0xff]
    %v70 = vld [vmem:[#allocation5 + $0x70] sm:$0xff]
    %v71 = vld [vmem:[#allocation5 + $0x78] sm:$0xff]
    %vm72 = vcmask 261120
    %v74 = vsel %vm72, %v55, 0
    %76 = vmatprep.subr.mxu0 0.0
    %77 = vmatpush1.msra.mxu0 0.0
    %78 = vmatprep.subr.mxu0 0.0
    %79 = vmatpush1.msra.mxu0 0.0
    %80 = vmatprep.subr.mxu0 0.0
    %81 = vmatpush1.msra.mxu0 0.0
    %82 = vmatprep.subr.mxu0 0.0
    %83 = vmatpush1.msra.mxu0 0.0
    %84 = vmatprep.subr.mxu0 0.0
    %85 = vmatpush1.msra.mxu0 0.0
    %86 = vmatprep.subr.mxu0 0.0
    %87 = vmatpush1.msra.mxu0 0.0
    %88 = vmatprep.subr.mxu0 0.0
    %89 = vmatpush1.msra.mxu0 0.0
    %90 = vmatprep.subr.mxu0 0.0
    %91 = vmatpush1.msra.mxu0 0.0
    %92 = vmatprep.subr.mxu0 0.0
    %93 = vmatpush1.msra.mxu0 0.0
    %94 = vmatprep.subr.mxu0 0.0
    %95 = vmatpush1.msra.mxu0 0.0
    %96 = vmatprep.subr.mxu0 0.0
    %97 = vmatpush1.msra.mxu0 0.0
    %98 = vmatprep.subr.mxu0 0.0
    %99 = vmatpush1.msra.mxu0 0.0
    %100 = vmatprep.subr.mxu0 %v69
    %101 = vmatpush1.msra.mxu0 %v68
    %102 = vmatprep.subr.mxu0 %v65
    %103 = vmatpush1.msra.mxu0 %v64
    %104 = vmatprep.subr.mxu0 %v61
    %105 = vmatpush1.msra.mxu0 %v60
    %106 = vmatprep.subr.mxu0 %v57
    %107 = vmatpush1.msra.mxu0 %v56
    %108 = vmatprep.subr.mxu0 0.0
    %109 = vmatpush2.msra.mxu0 0.0
    %110 = vmatprep.subr.mxu0 0.0
    %111 = vmatpush2.msra.mxu0 0.0
    %112 = vmatprep.subr.mxu0 0.0
    %113 = vmatpush2.msra.mxu0 0.0
    %114 = vmatprep.subr.mxu0 0.0
    %115 = vmatpush2.msra.mxu0 0.0
    %116 = vmatprep.subr.mxu0 0.0
    %117 = vmatpush2.msra.mxu0 0.0
    %118 = vmatprep.subr.mxu0 0.0
    %119 = vmatpush2.msra.mxu0 0.0
    %120 = vmatprep.subr.mxu0 0.0
    %121 = vmatpush2.msra.mxu0 0.0
    %122 = vmatprep.subr.mxu0 0.0
    %123 = vmatpush2.msra.mxu0 0.0
    %124 = vmatprep.subr.mxu0 0.0
    %125 = vmatpush2.msra.mxu0 0.0
    %126 = vmatprep.subr.mxu0 0.0
    %127 = vmatpush2.msra.mxu0 0.0
    %128 = vmatprep.subr.mxu0 0.0
    %129 = vmatpush2.msra.mxu0 0.0
    %130 = vmatprep.subr.mxu0 0.0
    %131 = vmatpush2.msra.mxu0 0.0
    %132 = vmatprep.subr.mxu0 0.0
    %133 = vmatpush2.msra.mxu0 0.0
    %134 = vmatprep.subr.mxu0 0.0
    %135 = vmatpush2.msra.mxu0 0.0
    %136 = vmatprep.subr.mxu0 0.0
    %137 = vmatpush2.msra.mxu0 0.0
    %138 = vmatprep.subr.mxu0 0.0
    %139 = vmatpush2.msra.mxu0 0.0
    %140 = vmatprep.mubr.f32.mxu0 0.0
    %141 = vmatmul.mubr.f32.gmra.mxu0 %v74
    %v142 = vpop.f32.mrf.mxu0
    %v143 = vadd.f32 0.0, %v142
    %v144 = vpop.f32.mrf.mxu0
    %v145 = vadd.f32 0.0, %v144
    %146 = vdwg.mxu0
    %147 = vmatprep.subr.mxu0 0.0
    %148 = vmatpush1.msra.mxu0 0.0
    %149 = vmatprep.subr.mxu0 0.0
    %150 = vmatpush1.msra.mxu0 0.0
    %151 = vmatprep.subr.mxu0 0.0
    %152 = vmatpush1.msra.mxu0 0.0
    %153 = vmatprep.subr.mxu0 0.0
    %154 = vmatpush1.msra.mxu0 0.0
    %155 = vmatprep.subr.mxu0 0.0
    %156 = vmatpush1.msra.mxu0 0.0
    %157 = vmatprep.subr.mxu0 0.0
    %158 = vmatpush1.msra.mxu0 0.0
    %159 = vmatprep.subr.mxu0 0.0
    %160 = vmatpush1.msra.mxu0 0.0
    %161 = vmatprep.subr.mxu0 0.0
    %162 = vmatpush1.msra.mxu0 0.0
    %163 = vmatprep.subr.mxu0 0.0
    %164 = vmatpush1.msra.mxu0 0.0
    %165 = vmatprep.subr.mxu0 0.0
    %166 = vmatpush1.msra.mxu0 0.0
    %167 = vmatprep.subr.mxu0 0.0
    %168 = vmatpush1.msra.mxu0 0.0
    %169 = vmatprep.subr.mxu0 0.0
    %170 = vmatpush1.msra.mxu0 0.0
    %171 = vmatprep.subr.mxu0 %v71
    %172 = vmatpush1.msra.mxu0 %v70
    %173 = vmatprep.subr.mxu0 %v67
    %174 = vmatpush1.msra.mxu0 %v66
    %175 = vmatprep.subr.mxu0 %v63
    %176 = vmatpush1.msra.mxu0 %v62
    %177 = vmatprep.subr.mxu0 %v59
    %178 = vmatpush1.msra.mxu0 %v58
    %179 = vmatprep.subr.mxu0 0.0
    %180 = vmatpush2.msra.mxu0 0.0
    %181 = vmatprep.subr.mxu0 0.0
    %182 = vmatpush2.msra.mxu0 0.0
    %183 = vmatprep.subr.mxu0 0.0
    %184 = vmatpush2.msra.mxu0 0.0
    %185 = vmatprep.subr.mxu0 0.0
    %186 = vmatpush2.msra.mxu0 0.0
    %187 = vmatprep.subr.mxu0 0.0
    %188 = vmatpush2.msra.mxu0 0.0
    %189 = vmatprep.subr.mxu0 0.0
    %190 = vmatpush2.msra.mxu0 0.0
    %191 = vmatprep.subr.mxu0 0.0
    %192 = vmatpush2.msra.mxu0 0.0
    %193 = vmatprep.subr.mxu0 0.0
    %194 = vmatpush2.msra.mxu0 0.0
    %195 = vmatprep.subr.mxu0 0.0
    %196 = vmatpush2.msra.mxu0 0.0
    %197 = vmatprep.subr.mxu0 0.0
    %198 = vmatpush2.msra.mxu0 0.0
    %199 = vmatprep.subr.mxu0 0.0
    %200 = vmatpush2.msra.mxu0 0.0
    %201 = vmatprep.subr.mxu0 0.0
    %202 = vmatpush2.msra.mxu0 0.0
    %203 = vmatprep.subr.mxu0 0.0
    %204 = vmatpush2.msra.mxu0 0.0
    %205 = vmatprep.subr.mxu0 0.0
    %206 = vmatpush2.msra.mxu0 0.0
    %207 = vmatprep.subr.mxu0 0.0
    %208 = vmatpush2.msra.mxu0 0.0
    %209 = vmatprep.subr.mxu0 0.0
    %210 = vmatpush2.msra.mxu0 0.0
    %211 = vmatprep.mubr.f32.mxu0 0.0
    %212 = vmatmul.mubr.f32.gmra.mxu0 %v74
    %v213 = vpop.f32.mrf.mxu0
    %v214 = vadd.f32 0.0, %v213
    %v215 = vpop.f32.mrf.mxu0
    %v216 = vadd.f32 0.0, %v215
    %217 = vdwg.mxu0
    %v218 = vrot.slane %v143, 4
    %v219 = vadd.f32 %v143, %v218
    %v220 = vrot.slane %v219, 2
    %v221 = vadd.f32 %v219, %v220
    %v222 = vrot.slane %v221, 1
    %v223 = vadd.f32 %v221, %v222
    %v224 = vrot.slane %v145, 4
    %v225 = vadd.f32 %v145, %v224
    %v226 = vrot.slane %v225, 2
    %v227 = vadd.f32 %v225, %v226
    %v228 = vrot.slane %v227, 1
    %v229 = vadd.f32 %v227, %v228
    %v230 = vrot.slane %v214, 4
    %v231 = vadd.f32 %v214, %v230
    %v232 = vrot.slane %v231, 2
    %v233 = vadd.f32 %v231, %v232
    %v234 = vrot.slane %v233, 1
    %v235 = vadd.f32 %v233, %v234
    %v236 = vrot.slane %v216, 4
    %v237 = vadd.f32 %v216, %v236
    %v238 = vrot.slane %v237, 2
    %v239 = vadd.f32 %v237, %v238
    %v240 = vrot.slane %v239, 1
    %v241 = vadd.f32 %v239, %v240
    %v242 = vrcp.pop 8.0
    %v243 = vmul.f32 %v223, %v242
    %v244 = vmul.f32 %v229, %v242
    %v245 = vmul.f32 %v235, %v242
    %v246 = vmul.f32 %v241, %v242
    %v247 = vsub.f32 %v143, %v243
    %v248 = vsub.f32 %v145, %v244
    %v249 = vsub.f32 %v214, %v245
    %v250 = vsub.f32 %v216, %v246
    %v251 = vmul.f32 %v247, %v247
    %v252 = vmul.f32 %v248, %v248
    %v253 = vmul.f32 %v249, %v249
    %v254 = vmul.f32 %v250, %v250
    %v255 = vrot.slane %v251, 4
    %v256 = vadd.f32 %v251, %v255
    %v257 = vrot.slane %v256, 2
    %v258 = vadd.f32 %v256, %v257
    %v259 = vrot.slane %v258, 1
    %v260 = vadd.f32 %v258, %v259
    %v261 = vrot.slane %v252, 4
    %v262 = vadd.f32 %v252, %v261
    %v263 = vrot.slane %v262, 2
    %v264 = vadd.f32 %v262, %v263
    %v265 = vrot.slane %v264, 1
    %v266 = vadd.f32 %v264, %v265
    %v267 = vrot.slane %v253, 4
    %v268 = vadd.f32 %v253, %v267
    %v269 = vrot.slane %v268, 2
    %v270 = vadd.f32 %v268, %v269
    %v271 = vrot.slane %v270, 1
    %v272 = vadd.f32 %v270, %v271
    %v273 = vrot.slane %v254, 4
    %v274 = vadd.f32 %v254, %v273
    %v275 = vrot.slane %v274, 2
    %v276 = vadd.f32 %v274, %v275
    %v277 = vrot.slane %v276, 1
    %v278 = vadd.f32 %v276, %v277
    %v279 = vmul.f32 %v260, %v242
    %v280 = vmul.f32 %v266, %v242
    %v281 = vmul.f32 %v272, %v242
    %v282 = vmul.f32 %v278, %v242
    %v283 = vld [vmem:[#allocation7] sm:$0xf]
    %v284 = vadd.f32 %v279, 1e-05
    %v285 = vadd.f32 %v280, 1e-05
    %v286 = vadd.f32 %v281, 1e-05
    %v287 = vadd.f32 %v282, 1e-05
    %v288 = vrsqrt.pop %v284
    %v289 = vrsqrt.pop %v285
    %v290 = vrsqrt.pop %v286
    %v291 = vrsqrt.pop %v287
    %v296 = vcombine.low %v288, %v289
    %v297 = vcombine.low %v290, %v291
    %v299 = vunpack.c.l.s4 1966171168
    %v300 = vunpack.c.0.s8 %v299
    %v301 = vlaneseq
    %v302 = vshrl.u32 %v301, 7
    %v303 = vsub.s32 %v300, %v302
    %v304 = vrot.slane %v296, %v303
    %v306 = vunpack.c.l.s4 1966171168
    %v307 = vunpack.c.0.s8 %v306
    %v308 = vlaneseq
    %v309 = vshrl.u32 %v308, 7
    %v310 = vsub.s32 %v307, %v309
    %v311 = vrot.slane %v297, %v310
    %v312 = vcombine.low %v304, %v311
    %v314 = vunpack.c.l.s4 1966171168
    %v315 = vunpack.c.0.s8 %v314
    %v316 = vlaneseq
    %v317 = vshrl.u32 %v316, 7
    %v318 = vsub.s32 %v315, %v317
    %v319 = vrot.slane %v312, %v318
    %v321 = vmul.f32 %v283, %v319
    %v323 = vlaneseq
    %v324 = vshrl.u32 %v323, 7
    %v325 = vsub.s32 0, %v324
    %v326 = vrot.slane %v321, %v325
    %v327 = vlaneseq
    %v328 = vshrl.u32 %v327, 7
    %v329 = vsub.s32 1, %v328
    %v330 = vrot.slane %v321, %v329
    %v331 = vlaneseq
    %v332 = vshrl.u32 %v331, 7
    %v333 = vsub.s32 2, %v332
    %v334 = vrot.slane %v321, %v333
    %v335 = vlaneseq
    %v336 = vshrl.u32 %v335, 7
    %v337 = vsub.s32 3, %v336
    %v338 = vrot.slane %v321, %v337
    %v343 = vmul.f32 %v247, %v326
    %v344 = vmul.f32 %v248, %v330
    %v345 = vmul.f32 %v249, %v334
    %v346 = vmul.f32 %v250, %v338
    %v347 = vld [vmem:[%s3] sm:$0xf]
    %v349 = vlaneseq
    %v350 = vshrl.u32 %v349, 7
    %v351 = vsub.s32 0, %v350
    %v352 = vrot.slane %v347, %v351
    %v353 = vlaneseq
    %v354 = vshrl.u32 %v353, 7
    %v355 = vsub.s32 1, %v354
    %v356 = vrot.slane %v347, %v355
    %v357 = vlaneseq
    %v358 = vshrl.u32 %v357, 7
    %v359 = vsub.s32 2, %v358
    %v360 = vrot.slane %v347, %v359
    %v361 = vlaneseq
    %v362 = vshrl.u32 %v361, 7
    %v363 = vsub.s32 3, %v362
    %v364 = vrot.slane %v347, %v363
    %v369 = vadd.f32 %v343, %v352
    %v370 = vadd.f32 %v344, %v356
    %v371 = vadd.f32 %v345, %v360
    %v372 = vadd.f32 %v346, %v364
    %v373 = vmax.f32 %v369, 0.0
    %v374 = vmax.f32 %v370, 0.0
    %v375 = vmax.f32 %v371, 0.0
    %v376 = vmax.f32 %v372, 0.0
    %377 = vst [vmem:[#allocation8] sm:$0xff] %v373
    %378 = vst [vmem:[#allocation8 + $0x8] sm:$0xff] %v374
    %379 = vst [vmem:[#allocation8 + $0x10] sm:$0xff] %v375
    %380 = vst [vmem:[#allocation8 + $0x18] sm:$0xff] %v376
    // Predicated region
    $region30: #{special_fc.1} parent=1 // pred_check
      _
    $region31: #{special_fc.1} parent=1 // pred_check_branch
      %382 = sbr.rel (0) target = $region33
    $region32: #{special_fc.1} parent=1 // pred_region
      %s384 = ssub.s32 512, 512
      %385 = vsyncadd [#allocation4], %s384
      %s387 = sshll.u32 [#allocation8], 4
      %s388 = int_to_ptr.vmem [resolvable:$true] %s387
      %390 = dma.vmem_to_hbm [thread:$0]  %s388, 512, %s4, [#allocation4]
    $region33: #{special_fc.1} parent=1 // pred_fallthru
      _
    // Predicated region
    $region34: #{special_fc.1} parent=1 // pred_check
      _
    $region35: #{special_fc.1} parent=1 // pred_check_branch
      %392 = sbr.rel (0) target = $region37
    $region36: #{special_fc.1} parent=1 // pred_region
      %393 = dma.done [#allocation4], 512
    $region37: #{special_fc.1} parent=1 // pred_fallthru
      _
    %394 = vsyncpa [#allocation3], 1
    %395 = vsyncpa [#allocation6], 1
    %396 = vsyncpa [#allocation4], 1

</llo_original>
